<compile_context>
chip_gen: v6e
topology: v6e:2x2x1
jax: 0.10.0
libtpu: 0.0.40
codegen_flags: <defaults>
</compile_context>

<pallas_src>
import functools
import math

import jax
import jax.numpy as jnp
from jax import lax
from jax.experimental import pallas as pl
from jax.experimental.pallas import tpu as pltpu

LANES = 128
SUBLANES = 8
MAX_TM = 2048                          # (2048,128) f32 = 1 MiB streaming blocks
SLAB_VMEM_BUDGET = 16 * 1024 * 1024    # VMEM-resident search when slab fits
_SEARCH_VMEM_LIMIT = 48 * 1024 * 1024

_EPS = 1e-8
_P = 2.4
_TINY = 1e-30
_SQRT_EPS = 3.4526698e-4               # sqrt(float32 eps) -- f32-appropriate tol
_GOLDEN_MEAN = 0.5 * (3.0 - math.sqrt(5.0))


# ---------------------------------------------------------------------------
# Planning helpers
# ---------------------------------------------------------------------------
def _slab_dtype(dt):
    dt = jnp.dtype(dt)
    if dt in (jnp.dtype(jnp.float32), jnp.dtype(jnp.bfloat16)):
        return dt
    return jnp.dtype(jnp.float32)


def _plan(n, slab_dt):
    """Rows padded so the (rows,128) slab splits into nchunks tiles of tm rows."""
    align = 16 if jnp.dtype(slab_dt).itemsize == 2 else SUBLANES
    rows = max(align, -(-n // LANES))
    rows = ((rows + align - 1) // align) * align
    tm = min(MAX_TM, rows)
    nchunks = -(-rows // tm)
    return nchunks * tm, tm, nchunks


def _qparams(new_min, new_max, symmetric, qmin, qmax):
    """ObserverBase.calculate_qparams on (possibly traced) f32 scalars."""
    min_neg = jnp.minimum(new_min, 0.0)
    max_pos = jnp.maximum(new_max, 0.0)
    if symmetric:
        max_pos = jnp.maximum(-min_neg, max_pos)
        scale = jnp.maximum(max_pos / ((qmax - qmin) / 2.0), _EPS)
        zp = jnp.zeros_like(scale)
    else:
        scale = jnp.maximum((max_pos - min_neg) / (qmax - qmin), _EPS)
        zp = jnp.clip(qmin - jnp.round(min_neg / scale), qmin, qmax)
    return scale, zp


# ---------------------------------------------------------------------------
# scipy.optimize.minimize_scalar(method='Bounded') as a lax.while_loop.
# func(x) -> (fval, aux); returns (x_best, f_best, aux_best).
# Usable both at the JAX level and inside a Pallas kernel body.
# ---------------------------------------------------------------------------
def _fminbound(func, x1, x2, xatol=1e-5, maxiter=500):
    a = jnp.asarray(x1, jnp.float32)
    b = jnp.asarray(x2, jnp.float32)
    xf = a + _GOLDEN_MEAN * (b - a)
    fulc = xf
    nfc = xf
    rat = jnp.float32(0.0)
    e = jnp.float32(0.0)
    fx, aux = func(xf)
    fx = jnp.asarray(fx, jnp.float32)
    aux = jnp.asarray(aux, jnp.float32)
    ffulc = fx
    fnfc = fx
    xm = 0.5 * (a + b)
    tol1 = _SQRT_EPS * jnp.abs(xf) + xatol / 3.0
    tol2 = 2.0 * tol1
    num = jnp.int32(1)

    carry = (a, b, fulc, nfc, xf, rat, e, fx, ffulc, fnfc, xm, tol1, tol2, num, aux)

    def cond(c):
        a, b, _, _, xf, _, _, _, _, _, xm, _, tol2, num, _ = c
        return (jnp.abs(xf - xm) > (tol2 - 0.5 * (b - a))) & (num < maxiter)

    def body(c):
        (a, b, fulc, nfc, xf, rat, e, fx, ffulc, fnfc, xm, tol1, tol2, num, aux) = c

        # attempted parabolic fit
        tried_para = jnp.abs(e) > tol1
        r = (xf - nfc) * (fx - ffulc)
        q = (xf - fulc) * (fx - fnfc)
        p = (xf - fulc) * q - (xf - nfc) * r
        q = 2.0 * (q - r)
        p = jnp.where(q > 0.0, -p, p)
        q = jnp.abs(q)
        para_ok = (tried_para
                   & (jnp.abs(p) < jnp.abs(0.5 * q * e))
                   & (p > q * (a - xf)) & (p < q * (b - xf)))
        q_safe = jnp.where(q == 0.0, 1.0, q)
        rat_para = p / q_safe
        x_para = xf + rat_para
        near_edge = ((x_para - a) < tol2) | ((b - x_para) < tol2)
        si_edge = jnp.where((xm - xf) < 0.0, -1.0, 1.0)
        rat_para = jnp.where(near_edge, tol1 * si_edge, rat_para)

        # golden-section step
        e_golden = jnp.where(xf >= xm, a - xf, b - xf)
        rat_golden = _GOLDEN_MEAN * e_golden

        e_new = jnp.where(para_ok, rat, e_golden)
        rat_new = jnp.where(para_ok, rat_para, rat_golden)

        si = jnp.where(rat_new < 0.0, -1.0, 1.0)
        x = xf + si * jnp.maximum(jnp.abs(rat_new), tol1)
        fu, aux_u = func(x)
        fu = jnp.asarray(fu, jnp.float32)
        aux_u = jnp.asarray(aux_u, jnp.float32)
        num = num + 1

        better = fu <= fx
        a_b = jnp.where(x >= xf, xf, a)
        b_b = jnp.where(x >= xf, b, xf)
        a_w = jnp.where(x < xf, x, a)
        b_w = jnp.where(x < xf, b, x)
        c1 = (fu <= fnfc) | (nfc == xf)
        c2 = (fu <= ffulc) | (fulc == xf) | (fulc == nfc)
        fulc_w = jnp.where(c1, nfc, jnp.where(c2, x, fulc))
        ffulc_w = jnp.where(c1, fnfc, jnp.where(c2, fu, ffulc))
        nfc_w = jnp.where(c1, x, nfc)
        fnfc_w = jnp.where(c1, fu, fnfc)

        a_n = jnp.where(better, a_b, a_w)
        b_n = jnp.where(better, b_b, b_w)
        fulc_n = jnp.where(better, nfc, fulc_w)
        ffulc_n = jnp.where(better, fnfc, ffulc_w)
        nfc_n = jnp.where(better, xf, nfc_w)
        fnfc_n = jnp.where(better, fx, fnfc_w)
        xf_n = jnp.where(better, x, xf)
        fx_n = jnp.where(better, fu, fx)
        aux_n = jnp.where(better, aux_u, aux)

        xm_n = 0.5 * (a_n + b_n)
        tol1_n = _SQRT_EPS * jnp.abs(xf_n) + xatol / 3.0
        tol2_n = 2.0 * tol1_n
        return (a_n, b_n, fulc_n, nfc_n, xf_n, rat_new, e_new,
                fx_n, ffulc_n, fnfc_n, xm_n, tol1_n, tol2_n, num, aux_n)

    out = lax.while_loop(cond, body, carry)
    return out[4], out[7], out[14]


# ---------------------------------------------------------------------------
# QDrop AvgMSEFastObserver range/shift search, given a loss evaluator.
# loss_fx(new_min, new_max) -> scalar Lp loss (traceable in- or out-of-kernel).
# ---------------------------------------------------------------------------
def _search_best_range(loss_fx, one_side_dist, symmetric, qmin, qmax, x_min, x_max):
    zero = jnp.float32(0.0)
    if one_side_dist != "no" or symmetric:
        xr0 = jnp.maximum(jnp.abs(x_min), x_max)
        lo = jnp.minimum(jnp.float32(0.1), 0.01 * xr0)

        def range_loss(r):
            new_min = zero if one_side_dist == "pos" else -r
            new_max = zero if one_side_dist == "neg" else r
            return loss_fx(new_min, new_max), zero

        best_r, _, _ = _fminbound(range_loss, lo, xr0)
        best_min = zero if one_side_dist == "pos" else -best_r
        best_max = zero if one_side_dist == "neg" else best_r
        return best_min, best_max

    xr0 = x_max - x_min
    lo = jnp.minimum(jnp.float32(0.1), 0.01 * xr0)

    def shift_loss(shift, r):
        return loss_fx(zero - shift, r - shift)

    def range_loss(r):
        delta = r / (qmax - qmin)
        s_best, fval, _ = _fminbound(lambda s: (shift_loss(s, r), zero),
                                     delta * qmin, delta * qmax)
        return fval, s_best          # thread the best shift out: no 3rd inner Brent

    best_r, _, best_s = _fminbound(range_loss, lo, xr0)
    best_min = jnp.maximum(zero - best_s, x_min)
    best_max = jnp.minimum(best_r - best_s, x_max)
    return best_min, best_max


# ---------------------------------------------------------------------------
# Pallas kernels (built per static shape plan, cached)
# ---------------------------------------------------------------------------
@functools.lru_cache(maxsize=None)
def _build_prepare_minmax(shape, dtype_name):
    """jit: x -> (native-dtype (nchunks,tm,128) slab, global min, global max)."""
    n = math.prod(shape)
    sdt = _slab_dtype(dtype_name)
    rows, tm, nchunks = _plan(n, sdt)

    def kernel(x_ref, min_ref, max_ref):
        x = x_ref[0].astype(jnp.float32)
        g = x.reshape(tm // SUBLANES, SUBLANES, LANES)
        # No validity mask: zero padding only pulls min towards <=0 / max towards
        # >=0, which is invariant for one_side_dist classification and for the
        # downstream min(.,0)/max(.,0) clamps in calculate_qparams / the search.
        min_ref[...] = jnp.min(g, axis=0).reshape(1, SUBLANES, LANES)
        max_ref[...] = jnp.max(g, axis=0).reshape(1, SUBLANES, LANES)

    call = pl.pallas_call(
        kernel,
        grid=(nchunks,),
        in_specs=[pl.BlockSpec((1, tm, LANES), lambda i: (i, 0, 0))],
        out_specs=(pl.BlockSpec((1, SUBLANES, LANES), lambda i: (i, 0, 0)),
                   pl.BlockSpec((1, SUBLANES, LANES), lambda i: (i, 0, 0))),
        out_shape=(jax.ShapeDtypeStruct((nchunks, SUBLANES, LANES), jnp.float32),
                   jax.ShapeDtypeStruct((nchunks, SUBLANES, LANES), jnp.float32)),
        compiler_params=pltpu.CompilerParams(dimension_semantics=("parallel",)),
    )

    @jax.jit
    def prep(x):
        flat = jnp.ravel(x).astype(sdt)
        slab = jnp.pad(flat, (0, rows * LANES - n)).reshape(nchunks, tm, LANES)
        pmin, pmax = call(slab)
        return slab, jnp.min(pmin), jnp.max(pmax)

    return prep, (rows, tm, nchunks, n, sdt.name)


@functools.lru_cache(maxsize=None)
def _build_search(rows, tm, nchunks, n, slab_dtype_name, one_side_dist,
                  symmetric, quant_min, quant_max):
    """Whole MSE range search inside ONE pallas_call: the slab is DMA'd from HBM
    into a VMEM scratch once; every Brent probe re-reads it from VMEM."""
    sdt = jnp.dtype(slab_dtype_name)
    qmin_f, qmax_f = float(quant_min), float(quant_max)
    inv_n = 1.0 / float(n)

    def kernel(mm_ref, x_hbm, out_ref, xbuf, sem):
        cp = pltpu.make_async_copy(x_hbm, xbuf, sem)
        cp.start()
        cp.wait()
        x_min = mm_ref[0]
        x_max = mm_ref[1]

        def loss_fx(new_min, new_max):
            scale, zp = _qparams(new_min, new_max, symmetric, qmin_f, qmax_f)
            inv_scale = 1.0 / scale
            lo = qmin_f - zp
            hi = qmax_f - zp

            def chunk(c, acc):
                xc = xbuf[c].astype(jnp.float32)
                d = jnp.abs(jnp.clip(jnp.round(xc * inv_scale), lo, hi) * scale - xc)
                # |d|^p via exp/log; underflows to exactly 0 for d==0 (padding),
                # so no validity mask and no extra select are needed.
                powed = jnp.exp(_P * jnp.log(jnp.maximum(d, _TINY)))
                return acc + jnp.sum(powed.reshape(tm // SUBLANES, SUBLANES, LANES),
                                     axis=0)

            acc0 = jnp.zeros((SUBLANES, LANES), jnp.float32)
            acc = chunk(0, acc0) if nchunks == 1 else lax.fori_loop(0, nchunks, chunk, acc0)
            return jnp.sum(acc) * inv_n

        bmin, bmax = _search_best_range(loss_fx, one_side_dist, symmetric,
                                        qmin_f, qmax_f, x_min, x_max)
        out_ref[0] = bmin
        out_ref[1] = bmax

    call = pl.pallas_call(
        kernel,
        in_specs=[pl.BlockSpec(memory_space=pltpu.MemorySpace.SMEM),
                  pl.BlockSpec(memory_space=pl.ANY)],
        out_specs=pl.BlockSpec(memory_space=pltpu.MemorySpace.SMEM),
        out_shape=jax.ShapeDtypeStruct((2,), jnp.float32),
        scratch_shapes=[pltpu.VMEM((nchunks, tm, LANES), sdt),
                        pltpu.SemaphoreType.DMA],
        compiler_params=pltpu.CompilerParams(vmem_limit_bytes=_SEARCH_VMEM_LIMIT),
    )

    @jax.jit
    def search(slab, x_min, x_max):
        mm = jnp.stack([x_min, x_max]).astype(jnp.float32)
        out = call(mm, slab)
        return out[0], out[1]

    return search


@functools.lru_cache(maxsize=None)
def _build_search_fallback(one_side_dist, symmetric, quant_min, quant_max):
    """Slab too large for VMEM residency: same search, plain-XLA streaming loss."""
    # TODO(synk): could be a streaming Pallas loss kernel; plain XLA is HBM-bound here too.
    qmin_f, qmax_f = float(quant_min), float(quant_max)

    @jax.jit
    def search(flat, x_min, x_max):
        inv_n = 1.0 / flat.size

        def loss_fx(new_min, new_max):
            scale, zp = _qparams(new_min, new_max, symmetric, qmin_f, qmax_f)
            xdq = jnp.clip(jnp.round(flat / scale), qmin_f - zp, qmax_f - zp) * scale
            d = jnp.abs(xdq - flat)
            return jnp.sum(jnp.exp(_P * jnp.log(jnp.maximum(d, _TINY)))) * inv_n

        return _search_best_range(loss_fx, one_side_dist, symmetric,
                                  qmin_f, qmax_f, x_min, x_max)

    return search


@functools.lru_cache(maxsize=None)
def _build_fakequant(shape, dtype_name):
    """Tiled fake_quantize_per_tensor_affine: the bulk (whole (align,128) row
    groups) is a free reshape view of flat x -> Pallas; the small ragged tail is
    a jnp epilogue.  Output stays in x.dtype (no pad / slice / cast passes)."""
    dt = jnp.dtype(dtype_name)
    n = math.prod(shape)
    pallas_ok = dt in (jnp.dtype(jnp.float32), jnp.dtype(jnp.bfloat16))
    align = 16 if dt.itemsize == 2 else SUBLANES
    rows_bulk = (n // (align * LANES)) * align if pallas_ok else 0
    n_bulk = rows_bulk * LANES

    call = None
    if rows_bulk > 0:
        tm = min(MAX_TM, rows_bulk)
        nblk = -(-rows_bulk // tm)

        def kernel(p_ref, x_ref, o_ref):
            inv_s, lo, hi, sc = p_ref[0], p_ref[1], p_ref[2], p_ref[3]
            xf = x_ref[...].astype(jnp.float32)
            o_ref[...] = (jnp.clip(jnp.round(xf * inv_s), lo, hi) * sc).astype(o_ref.dtype)

        call = pl.pallas_call(
            kernel,
            grid=(nblk,),
            in_specs=[pl.BlockSpec(memory_space=pltpu.MemorySpace.SMEM),
                      pl.BlockSpec((tm, LANES), lambda i: (i, 0))],
            out_specs=pl.BlockSpec((tm, LANES), lambda i: (i, 0)),
            out_shape=jax.ShapeDtypeStruct((rows_bulk, LANES), dt),
            compiler_params=pltpu.CompilerParams(dimension_semantics=("parallel",)),
        )

    @jax.jit
    def apply(x, params):
        flat = jnp.ravel(x)
        pieces = []
        if call is not None:
            bulk = call(params, flat[:n_bulk].reshape(rows_bulk, LANES))
            pieces.append(jnp.ravel(bulk))
        if n_bulk < n:
            t = flat[n_bulk:].astype(jnp.float32)
            tq = jnp.clip(jnp.round(t * params[0]), params[1], params[2]) * params[3]
            pieces.append(tq.astype(x.dtype))
        out = pieces[0] if len(pieces) == 1 else jnp.concatenate(pieces)
        return out.reshape(shape)

    return apply


# ---------------------------------------------------------------------------
# Observer (QDrop AvgMSEFastObserver, per-tensor)
# ---------------------------------------------------------------------------
class AvgMSEFastObserverPallas:
    def __init__(self, bit=8, symmetric=False, ch_axis=-1):
        assert ch_axis == -1, "per-tensor observer only"
        self.bit = bit
        self.symmetric = symmetric
        self.ch_axis = ch_axis
        self.eps = _EPS
        if symmetric:
            self.quant_min = -(2 ** (bit - 1))
            self.quant_max = 2 ** (bit - 1) - 1
        else:
            self.quant_min = 0
            self.quant_max = 2 ** bit - 1
        self.p = _P
        self.one_side_dist = None
        self.min_val = float("inf")        # device scalar after first forward
        self.max_val = float("-inf")
        self.cnt = 0

    def calculate_qparams(self, min_val, max_val):
        return _qparams(jnp.asarray(min_val, jnp.float32),
                        jnp.asarray(max_val, jnp.float32),
                        self.symmetric, float(self.quant_min), float(self.quant_max))

    def forward(self, x):
        if x.size == 0:
            return x
        shape = tuple(int(s) for s in x.shape)
        prep, (rows, tm, nchunks, n, sdt_name) = _build_prepare_minmax(shape, str(x.dtype))
        slab, xmin_d, xmax_d = prep(x)

        if self.one_side_dist is None:
            # single blocking readback, first calibration batch only
            x_min_h, x_max_h = float(xmin_d), float(xmax_d)
            self.one_side_dist = ("pos" if x_min_h >= 0.0
                                  else "neg" if x_max_h <= 0.0 else "no")

        slab_bytes = rows * LANES * jnp.dtype(sdt_name).itemsize
        if slab_bytes <= SLAB_VMEM_BUDGET:
            search = _build_search(rows, tm, nchunks, n, sdt_name, self.one_side_dist,
                                   self.symmetric, self.quant_min, self.quant_max)
            best_min, best_max = search(slab, xmin_d, xmax_d)
        else:
            search = _build_search_fallback(self.one_side_dist, self.symmetric,
                                            self.quant_min, self.quant_max)
            best_min, best_max = search(jnp.ravel(x).astype(jnp.float32), xmin_d, xmax_d)

        # running average kept on device (no host sync)
        if self.cnt == 0:
            self.min_val, self.max_val = best_min, best_max
        else:
            c = float(self.cnt)
            self.min_val = (self.min_val * c + best_min) / (c + 1.0)
            self.max_val = (self.max_val * c + best_max) / (c + 1.0)
        self.cnt += 1
        return x

    __call__ = forward


# ---------------------------------------------------------------------------
# FixedFakeQuantize (the spec module)
# ---------------------------------------------------------------------------
class FixedFakeQuantizePallas:
    def __init__(self, observer=AvgMSEFastObserverPallas, bit=8, symmetric=False, ch_axis=-1):
        self.observer = observer(bit=bit, symmetric=symmetric, ch_axis=ch_axis)
        self.bit = bit
        self.symmetric = symmetric
        self.ch_axis = ch_axis
        self.observer_enabled = 0
        self.fake_quant_enabled = 0
        self.quant_min = self.observer.quant_min
        self.quant_max = self.observer.quant_max
        self.drop_prob = 1.0               # FixedFakeQuantize always uses drop_prob == 1.0
        self.scale = 1.0                   # device scalars after calibration
        self.zero_point = 0.0

    def enable_observer(self):
        self.observer_enabled = 1

    def disable_observer(self):
        self.observer_enabled = 0

    def enable_fake_quant(self):
        self.fake_quant_enabled = 1

    def disable_fake_quant(self):
        self.fake_quant_enabled = 0

    def calculate_qparams(self, min_val, max_val):
        return self.observer.calculate_qparams(min_val, max_val)

    def forward(self, X):
        if self.observer_enabled == 1:
            self.observer.forward(lax.stop_gradient(X))
            _scale, _zp = self.observer.calculate_qparams(self.observer.min_val,
                                                          self.observer.max_val)
            self.scale, self.zero_point = _scale, _zp      # stay on device
        if self.fake_quant_enabled == 1:
            # TODO(synk): per-channel fake-quant path (ch_axis != -1) not implemented;
            # the attached observer is per-tensor only (ch_axis == -1).
            apply_fq = _build_fakequant(tuple(int(s) for s in X.shape), str(X.dtype))
            scale = jnp.maximum(jnp.asarray(self.scale, jnp.float32), _EPS)
            zp = jnp.asarray(self.zero_point, jnp.float32)
            params = jnp.stack([1.0 / scale, self.quant_min - zp,
                                self.quant_max - zp, scale])
            X = apply_fq(X, params)
            # drop_prob == 1.0 -> no stochastic drop branch (matches FixedFakeQuantize)
        return X

    __call__ = forward


# ---------------------------------------------------------------------------
if __name__ == "__main__":
    key = jax.random.PRNGKey(0)
    x = jax.random.normal(key, (2, 4, 16, 16), dtype=jnp.float32)   # NCHW activation

    fq = FixedFakeQuantizePallas(AvgMSEFastObserverPallas, bit=8, symmetric=False, ch_axis=-1)

    # calibration: observer on (mixed-sign input -> 2-D range+shift search, one kernel call)
    fq.enable_observer()
    fq.forward(x)
    fq.forward(x * 0.5)          # exercises the running-average (cnt) update

    # inference: observer off, fake-quant on -> tiled per-tensor fake-quant kernel
    fq.disable_observer()
    fq.enable_fake_quant()
    y = fq.forward(x)
    y = jax.block_until_ready(y)

    # also exercise the one-sided (1-D symmetric-range) search path
    obs_pos = AvgMSEFastObserverPallas(bit=8, symmetric=False, ch_axis=-1)
    obs_pos.forward(jnp.abs(x))

    result = jnp.array([float(fq.scale), float(fq.zero_point),
                        float(obs_pos.min_val), float(obs_pos.max_val),
                        float(jnp.sum(y))], dtype=jnp.float32)
    jax.block_until_ready(result)
    print("KERNEL_OK")
</pallas_src>

<mosaic_0001>
module attributes {stable_mosaic.version = 11 : i64} {
  func.func @kernel(%arg0: i32, %arg1: memref<1x16x128xf32, #tpu.memory_space<vmem>>, %arg2: memref<1x8x128xf32, #tpu.memory_space<vmem>>, %arg3: memref<1x8x128xf32, #tpu.memory_space<vmem>>) attributes {dimension_semantics = [#tpu.dimension_semantics<parallel>], iteration_bounds = array<i64: 1>, scalar_prefetch = 0 : i64, scratch_operands = 0 : i64, tpu.core_type = #tpu.core_type<tc>, window_params = [{transform_indices = @transform_0, window_bounds = array<i64: 1, 16, 128>}, {transform_indices = @transform_1, window_bounds = array<i64: 1, 8, 128>}, {transform_indices = @transform_2, window_bounds = array<i64: 1, 8, 128>}]} {
    %c0 = arith.constant 0 : index
    %c0_0 = arith.constant 0 : index
    %c0_1 = arith.constant 0 : index
    %0 = vector.load %arg1[%c0, %c0_0, %c0_1] : memref<1x16x128xf32, #tpu.memory_space<vmem>>, vector<1x16x128xf32>
    %1 = vector.shape_cast %0 : vector<1x16x128xf32> to vector<16x128xf32>
    %2 = vector.shape_cast %1 : vector<16x128xf32> to vector<2x8x128xf32>
    %cst = arith.constant dense<0x7F800000> : vector<8x128xf32>
    %3 = vector.multi_reduction <minimumf>, %2, %cst [0] : vector<2x8x128xf32> to vector<8x128xf32>
    %4 = vector.shape_cast %3 : vector<8x128xf32> to vector<1x8x128xf32>
    %c0_2 = arith.constant 0 : index
    %c0_3 = arith.constant 0 : index
    %c0_4 = arith.constant 0 : index
    %5 = vector.load %arg2[%c0_2, %c0_3, %c0_4] : memref<1x8x128xf32, #tpu.memory_space<vmem>>, vector<1x8x128xf32>
    tpu.vector_store %arg2[%c0_2, %c0_3, %c0_4], %4 {strides = array<i32>} : memref<1x8x128xf32, #tpu.memory_space<vmem>>, vector<1x8x128xf32>,
    %cst_5 = arith.constant dense<0xFF800000> : vector<8x128xf32>
    %6 = vector.multi_reduction <maximumf>, %2, %cst_5 [0] : vector<2x8x128xf32> to vector<8x128xf32>
    %7 = vector.shape_cast %6 : vector<8x128xf32> to vector<1x8x128xf32>
    %c0_6 = arith.constant 0 : index
    %c0_7 = arith.constant 0 : index
    %c0_8 = arith.constant 0 : index
    %8 = vector.load %arg3[%c0_6, %c0_7, %c0_8] : memref<1x8x128xf32, #tpu.memory_space<vmem>>, vector<1x8x128xf32>
    tpu.vector_store %arg3[%c0_6, %c0_7, %c0_8], %7 {strides = array<i32>} : memref<1x8x128xf32, #tpu.memory_space<vmem>>, vector<1x8x128xf32>,
    return
  }
  func.func @transform_0(%arg0: i32) -> (i32, i32, i32) {
    %c0_i32 = arith.constant 0 : i32
    %c0_i32_0 = arith.constant 0 : i32
    %c0_i32_1 = arith.constant 0 : i32
    return %arg0, %c0_i32, %c0_i32_0 : i32, i32, i32
  }
  func.func @transform_1(%arg0: i32) -> (i32, i32, i32) {
    %c0_i32 = arith.constant 0 : i32
    %c0_i32_0 = arith.constant 0 : i32
    %c0_i32_1 = arith.constant 0 : i32
    return %arg0, %c0_i32, %c0_i32_0 : i32, i32, i32
  }
  func.func @transform_2(%arg0: i32) -> (i32, i32, i32) {
    %c0_i32 = arith.constant 0 : i32
    %c0_i32_0 = arith.constant 0 : i32
    %c0_i32_1 = arith.constant 0 : i32
    return %arg0, %c0_i32, %c0_i32_0 : i32, i32, i32
  }
}

</mosaic_0001>

<llo_original>
// kernel: prep.1
$region0: #{prep.1}
  #allocation0 [shape = 'u32[]', space=smem, size = 0x4, offset = 0x4, fixed_abs, tag = 'smem constant byte address 0x4 - core index']
  #allocation1 [shape = 'u32[144,128]{1,0:T(1,128)}', space=vmem, size = 0x12000, scoped, tag = 'internal scratch']
  %s0 = inlined_call_operand.vmem [shape: f32[1,16,128], index: 0, kind: input, shape index: {}]
  %s1 = inlined_call_operand.vmem [shape: f32[1,8,128], index: 1, kind: output, shape index: {0}]
  %s2 = inlined_call_operand.vmem [shape: f32[1,8,128], index: 2, kind: output, shape index: {1}]
  %3 = xla_tuple %s1, %s2
  %s4 = sld [smem:[#allocation0]]
  $region22: #{prep.1} parent=0
    _
  %s6 = ssub.s32 1, %s4
  %s7 = scalar_select 0, %s6, %s4
  // Predicated region
  $region2: #{prep.1} parent=0 // pred_check
    _
  $region3: #{prep.1} parent=0 // pred_check_branch
    %9 = sbr.rel (0) target = $region5
  $region4: #{prep.1} parent=0 // pred_region
    _
  $region5: #{prep.1} parent=0 // pred_fallthru
    _
  %v10 = vld [vmem:[%s0] sm:$0xff]
  %v11 = vld [vmem:[%s0 + $0x8] sm:$0xff]
  %v12 = vmin.f32 %v10, %v11
  %13 = vst [vmem:[%s1] sm:$0xff] %v12
  %v14 = vmax.f32 %v10, %v11
  %15 = vst [vmem:[%s2] sm:$0xff] %v14
  // Predicated region
  $region6: #{prep.1} parent=0 // pred_check
    _
  $region7: #{prep.1} parent=0 // pred_check_branch
    %17 = sbr.rel (0) target = $region9
  $region8: #{prep.1} parent=0 // pred_region
    _
  $region9: #{prep.1} parent=0 // pred_fallthru
    _
  // Predicated region
  $region10: #{prep.1} parent=0 // pred_check
    _
  $region11: #{prep.1} parent=0 // pred_check_branch
    %19 = sbr.rel (0) target = $region13
  $region12: #{prep.1} parent=0 // pred_region
    _
  $region13: #{prep.1} parent=0 // pred_fallthru
    _
  // Predicated region
  $region14: #{prep.1} parent=0 // pred_check
    _
  $region15: #{prep.1} parent=0 // pred_check_branch
    %21 = sbr.rel (0) target = $region17
  $region16: #{prep.1} parent=0 // pred_region
    _
  $region17: #{prep.1} parent=0 // pred_fallthru
    _
  // Predicated region
  $region18: #{prep.1} parent=0 // pred_check
    _
  $region19: #{prep.1} parent=0 // pred_check_branch
    %23 = sbr.rel (0) target = $region21
  $region20: #{prep.1} parent=0 // pred_region
    _
  $region21: #{prep.1} parent=0 // pred_fallthru
    _

</llo_original>
